<compile_context>
chip_gen: v6e
topology: v6e:2x2x1
jax: 0.10.0
libtpu: 0.0.40
codegen_flags: <defaults>
</compile_context>

<pallas_src>
import math

import jax
import jax.numpy as jnp
from jax import lax
from jax.experimental import pallas as pl
from jax.experimental.pallas import tpu as pltpu


# contract the last dim of both operands (y = a @ b.T) without materializing b.T
_NT_DIMS = (((1,), (1,)), ((), ()))


def _round_up(x, m):
    return (x + m - 1) // m * m


def _attention_kernel(h_ref, enc_ref, w_ref, b_ref, o_ref, hp_ref, sc_ref):
    # h_ref   : (TB, D)         decoder hidden states (native dtype)
    # enc_ref : (TB, S, D)      encoder outputs       (native dtype)
    # w_ref   : (D, D)          nn.Linear weight, PyTorch [out, in] layout
    # b_ref   : (1, D)          nn.Linear bias
    # o_ref   : (TB, S_pad)     attention weights (lane-dense padded output)
    # hp_ref  : VMEM (TB, D)    f32 scratch: projected hidden
    # sc_ref  : VMEM (TB, S_pad) f32 scratch: raw scores
    TB, D = h_ref.shape
    S = enc_ref.shape[1]
    S_pad = o_ref.shape[1]

    # ---- 1) projection: y = x @ W^T + b  -- one MXU matmul with M = TB ----
    hp = lax.dot_general(h_ref[...], w_ref[...], _NT_DIMS,
                         preferred_element_type=jnp.float32)
    hp_ref[...] = hp + b_ref[...].astype(jnp.float32)

    # ---- 2) scores[b, s] = <enc[b, s, :], hp[b, :]> (batched matvec) ----
    # One 2-D NT dot per batch row; contraction is on the shared last (lane)
    # dim, so no transpose of the encoder tile is ever materialized.
    def _row(bi, carry):
        h_row = hp_ref[pl.ds(bi, 1), :].astype(enc_ref.dtype)          # (1, D)
        enc_b = enc_ref[bi]                                            # (S, D)
        s_row = lax.dot_general(h_row, enc_b, _NT_DIMS,
                                preferred_element_type=jnp.float32)    # (1, S)
        sc_ref[pl.ds(bi, 1), pl.ds(0, S)] = s_row
        return carry

    _ = lax.fori_loop(0, TB, _row, 0)

    # ---- 3) scale + masked softmax over the sequence axis ----
    inv_scale = 1.0 / math.sqrt(D)     # matches / sqrt(encoder_outputs.size(-1))
    scores = sc_ref[...] * jnp.float32(inv_scale)                      # (TB, S_pad)
    if S_pad != S:  # static: lane-padding columns must not contribute
        col = lax.broadcasted_iota(jnp.int32, (TB, S_pad), 1)
        scores = jnp.where(col < S, scores, jnp.float32(-1e30))

    m = jnp.max(scores, axis=-1, keepdims=True)
    e = jnp.exp(scores - m)
    l = jnp.sum(e, axis=-1, keepdims=True)
    r = pl.reciprocal(l, approx=True)
    r = r * (2.0 - l * r)              # one Newton step -> ~f32 accuracy
    o_ref[...] = (e * r).astype(o_ref.dtype)


def _pick_block_b(B, S, S_pad, D, in_bytes, out_bytes, budget_bytes=20 * 2**20):
    """Largest batch block (<=256, multiple of 8) whose double-buffered working
    set fits the VMEM budget; prefer a block that divides B (no batch padding)."""
    fixed = 2 * D * D * in_bytes + 2 * D * in_bytes            # weight + bias
    per_row = (2 * D * in_bytes                                # hidden block
               + 2 * S * D * in_bytes                          # encoder block
               + 2 * S_pad * out_bytes                         # output block
               + D * 4 + S_pad * 4)                            # f32 scratches
    avail = max(budget_bytes - fixed, 8 * per_row)
    cap = max(8, min(256, (avail // per_row) // 8 * 8))
    if B <= cap:
        return B, B                     # whole batch in one block (full-dim block)
    for tb in range(cap, 7, -8):        # largest multiple-of-8 divisor of B
        if B % tb == 0:
            return tb, B
    tb = cap
    return tb, _round_up(B, tb)


def scaled_dot_product_attention(hidden, encoder_outputs, w, b):
    """hidden: [B, D], encoder_outputs: [B, S, D], w: [D, D] (PyTorch [out,in]), b: [D]."""
    B, D = hidden.shape
    Be, S, De = encoder_outputs.shape
    assert B == Be and D == De

    out_dtype = hidden.dtype
    in_bytes = jnp.dtype(hidden.dtype).itemsize
    out_bytes = jnp.dtype(out_dtype).itemsize
    S_pad = _round_up(S, 128)                       # lane-dense output stores

    TB, B_pad = _pick_block_b(B, S, S_pad, D, in_bytes, out_bytes)
    if B_pad != B:
        hidden = jnp.pad(hidden, ((0, B_pad - B), (0, 0)))
        encoder_outputs = jnp.pad(encoder_outputs,
                                  ((0, B_pad - B), (0, 0), (0, 0)))
    b2 = b.reshape(1, D)

    grid = (B_pad // TB,)

    # Explicit VMEM budget (v7x has only 64 MiB physical / 32 MiB default scoped).
    vmem_need = (2 * TB * D * in_bytes + 2 * TB * S * D * in_bytes
                 + 2 * D * D * in_bytes + 2 * D * in_bytes
                 + 2 * TB * S_pad * out_bytes
                 + TB * D * 4 + TB * S_pad * 4)
    vmem_limit = int(min(110 * 2**20, vmem_need + 16 * 2**20))

    cost = pl.CostEstimate(
        flops=2 * B_pad * D * D + 2 * B_pad * S * D,
        transcendentals=B_pad * S_pad,
        bytes_accessed=((B_pad * D + B_pad * S * D + D * D + D) * in_bytes
                        + B_pad * S_pad * out_bytes),
    )

    out = pl.pallas_call(
        _attention_kernel,
        out_shape=jax.ShapeDtypeStruct((B_pad, S_pad), out_dtype),
        grid_spec=pltpu.PrefetchScalarGridSpec(
            num_scalar_prefetch=0,
            grid=grid,
            in_specs=[
                pl.BlockSpec((TB, D), lambda i: (i, 0)),         # hidden
                pl.BlockSpec((TB, S, D), lambda i: (i, 0, 0)),   # encoder outputs
                pl.BlockSpec((D, D), lambda i: (0, 0)),          # W (VMEM resident)
                pl.BlockSpec((1, D), lambda i: (0, 0)),          # bias
            ],
            out_specs=pl.BlockSpec((TB, S_pad), lambda i: (i, 0)),
            scratch_shapes=[
                pltpu.VMEM((TB, D), jnp.float32),
                pltpu.VMEM((TB, S_pad), jnp.float32),
            ],
        ),
        compiler_params=pltpu.CompilerParams(
            dimension_semantics=("parallel",),
            vmem_limit_bytes=vmem_limit,
        ),
        cost_estimate=cost,
    )(hidden, encoder_outputs, w, b2)

    if B_pad != B or S_pad != S:
        out = out[:B, :S]
    return out


def _reference(hidden, encoder_outputs, w, b):
    # pure-JAX reference of the PyTorch forward
    h = hidden @ w.T + b                                        # nn.Linear
    att = jnp.einsum("bsd,bd->bs", encoder_outputs, h)
    att = att / jnp.sqrt(jnp.float32(encoder_outputs.shape[-1]))
    return jax.nn.softmax(att, axis=1)


if __name__ == "__main__":
    B, hidden_dim, S = 2, 16, 8
    D = hidden_dim * 2  # 32

    key = jax.random.PRNGKey(0)
    k1, k2, k3, k4 = jax.random.split(key, 4)

    hidden = jax.random.normal(k1, (B, D), dtype=jnp.float32)
    encoder_outputs = jax.random.normal(k2, (B, S, D), dtype=jnp.float32)

    # Deterministic init of nn.Linear(hidden_dim*2, hidden_dim*2) params.
    # PyTorch weight shape is [out_features, in_features] = [D, D].
    bound = 1.0 / math.sqrt(D)
    w = jax.random.uniform(k3, (D, D), jnp.float32, -bound, bound)
    b = jax.random.uniform(k4, (D,), jnp.float32, -bound, bound)

    out = scaled_dot_product_attention(hidden, encoder_outputs, w, b)
    out = jax.block_until_ready(out)

    ref = _reference(hidden, encoder_outputs, w, b)
    assert out.shape == (B, S)
    assert jnp.allclose(out, ref, atol=2e-5, rtol=2e-5), "mismatch vs reference"

    print("KERNEL_OK")
</pallas_src>

<mosaic_0001>
module attributes {stable_mosaic.version = 11 : i64} {
  func.func @_attention_kernel(%arg0: i32, %arg1: memref<2x32xf32, #tpu.memory_space<vmem>>, %arg2: memref<2x8x32xf32, #tpu.memory_space<vmem>>, %arg3: memref<32x32xf32, #tpu.memory_space<vmem>>, %arg4: memref<1x32xf32, #tpu.memory_space<vmem>>, %arg5: memref<2x128xf32, #tpu.memory_space<vmem>>, %arg6: memref<2x32xf32, #tpu.memory_space<vmem>>, %arg7: memref<2x128xf32, #tpu.memory_space<vmem>>) attributes {dimension_semantics = [#tpu.dimension_semantics<parallel>], iteration_bounds = array<i64: 1>, scalar_prefetch = 0 : i64, scratch_operands = 2 : i64, tpu.core_type = #tpu.core_type<tc>, window_params = [{transform_indices = @transform_0, window_bounds = array<i64: 2, 32>}, {transform_indices = @transform_1, window_bounds = array<i64: 2, 8, 32>}, {pipeline_mode = #tpu.pipeline_mode<synchronous>, transform_indices = @transform_2, window_bounds = array<i64: 32, 32>}, {pipeline_mode = #tpu.pipeline_mode<synchronous>, transform_indices = @transform_3, window_bounds = array<i64: 1, 32>}, {transform_indices = @transform_4, window_bounds = array<i64: 2, 128>}]} {
    %c0 = arith.constant 0 : index
    %c0_0 = arith.constant 0 : index
    %0 = vector.load %arg1[%c0, %c0_0] : memref<2x32xf32, #tpu.memory_space<vmem>>, vector<2x32xf32>
    %c0_1 = arith.constant 0 : index
    %c0_2 = arith.constant 0 : index
    %1 = vector.load %arg3[%c0_1, %c0_2] : memref<32x32xf32, #tpu.memory_space<vmem>>, vector<32x32xf32>
    %cst = arith.constant dense<0.000000e+00> : vector<2x32xf32>
    %2 = tpu.matmul %0, %1, %cst {dimension_numbers = #tpu.dot_dimension_numbers<[1], [1], [0], [0], [0, 0, 1, 0], [], []>} : vector<2x32xf32>, vector<32x32xf32>, vector<2x32xf32> -> vector<2x32xf32>
    %c0_3 = arith.constant 0 : index
    %c0_4 = arith.constant 0 : index
    %3 = vector.load %arg4[%c0_3, %c0_4] : memref<1x32xf32, #tpu.memory_space<vmem>>, vector<1x32xf32>
    %4 = vector.broadcast %3 : vector<1x32xf32> to vector<2x32xf32>
    %5 = arith.addf %2, %4 : vector<2x32xf32>
    %c0_5 = arith.constant 0 : index
    %c0_6 = arith.constant 0 : index
    %6 = vector.load %arg6[%c0_5, %c0_6] : memref<2x32xf32, #tpu.memory_space<vmem>>, vector<2x32xf32>
    tpu.vector_store %arg6[%c0_5, %c0_6], %5 {strides = array<i32>} : memref<2x32xf32, #tpu.memory_space<vmem>>, vector<2x32xf32>,
    %c0_i32 = arith.constant 0 : i32
    %c2_i32 = arith.constant 2 : i32
    %7 = arith.addi %c0_i32, %c2_i32 : i32
    %c1_i32 = arith.constant 1 : i32
    scf.for %arg8 = %c0_i32 to %7 step %c1_i32  : i32 {
      %31 = arith.index_cast %arg8 : i32 to index
      %c0_17 = arith.constant 0 : index
      %32 = vector.load %arg6[%31, %c0_17] : memref<2x32xf32, #tpu.memory_space<vmem>>, vector<1x32xf32>
      %33 = arith.index_cast %arg8 : i32 to index
      %c0_18 = arith.constant 0 : index
      %c0_19 = arith.constant 0 : index
      %34 = vector.load %arg2[%33, %c0_18, %c0_19] : memref<2x8x32xf32, #tpu.memory_space<vmem>>, vector<1x8x32xf32>
      %35 = vector.shape_cast %34 : vector<1x8x32xf32> to vector<8x32xf32>
      %cst_20 = arith.constant dense<0.000000e+00> : vector<1x8xf32>
      %36 = tpu.matmul %32, %35, %cst_20 {dimension_numbers = #tpu.dot_dimension_numbers<[1], [1], [0], [0], [0, 0, 1, 0], [], []>} : vector<1x32xf32>, vector<8x32xf32>, vector<1x8xf32> -> vector<1x8xf32>
      %37 = arith.index_cast %arg8 : i32 to index
      %c0_21 = arith.constant 0 : index
      %38 = vector.load %arg7[%37, %c0_21] : memref<2x128xf32, #tpu.memory_space<vmem>>, vector<1x8xf32>
      tpu.vector_store %arg7[%37, %c0_21], %36 {strides = array<i32>} : memref<2x128xf32, #tpu.memory_space<vmem>>, vector<1x8xf32>,
    }
    %c2_i32_7 = arith.constant 2 : i32
    %c0_8 = arith.constant 0 : index
    %c0_9 = arith.constant 0 : index
    %8 = vector.load %arg7[%c0_8, %c0_9] : memref<2x128xf32, #tpu.memory_space<vmem>>, vector<2x128xf32>
    %cst_10 = arith.constant 0.176776692 : f32
    %9 = vector.broadcast %cst_10 : f32 to vector<2x128xf32>
    %10 = arith.mulf %8, %9 : vector<2x128xf32>
    %11 = tpu.iota {dimensions = array<i32: 1>} : vector<2x128xi32>
    %c8_i32 = arith.constant 8 : i32
    %12 = vector.broadcast %c8_i32 : i32 to vector<2x128xi32>
    %13 = arith.cmpi slt, %11, %12 : vector<2x128xi32>
    %cst_11 = arith.constant -1.000000e+30 : f32
    %14 = vector.broadcast %cst_11 : f32 to vector<2x128xf32>
    %15 = arith.select %13, %10, %14 : vector<2x128xi1>, vector<2x128xf32>
    %cst_12 = arith.constant dense<0xFF800000> : vector<2xf32>
    %16 = vector.multi_reduction <maximumf>, %15, %cst_12 [1] : vector<2x128xf32> to vector<2xf32>
    %17 = vector.shape_cast %16 : vector<2xf32> to vector<2x1xf32>
    %18 = vector.broadcast %17 : vector<2x1xf32> to vector<2x128xf32>
    %19 = arith.subf %15, %18 : vector<2x128xf32>
    %20 = math.exp %19 : vector<2x128xf32>
    %cst_13 = arith.constant dense<0.000000e+00> : vector<2xf32>
    %21 = vector.multi_reduction <add>, %20, %cst_13 [1] : vector<2x128xf32> to vector<2xf32>
    %22 = vector.shape_cast %21 : vector<2xf32> to vector<2x1xf32>
    %23 = tpu.reciprocal %22 {approx = true} : vector<2x1xf32> -> vector<2x1xf32>
    %24 = arith.mulf %22, %23 : vector<2x1xf32>
    %cst_14 = arith.constant 2.000000e+00 : f32
    %25 = vector.broadcast %cst_14 : f32 to vector<2x1xf32>
    %26 = arith.subf %25, %24 : vector<2x1xf32>
    %27 = arith.mulf %23, %26 : vector<2x1xf32>
    %28 = vector.broadcast %27 : vector<2x1xf32> to vector<2x128xf32>
    %29 = arith.mulf %20, %28 : vector<2x128xf32>
    %c0_15 = arith.constant 0 : index
    %c0_16 = arith.constant 0 : index
    %30 = vector.load %arg5[%c0_15, %c0_16] : memref<2x128xf32, #tpu.memory_space<vmem>>, vector<2x128xf32>
    tpu.vector_store %arg5[%c0_15, %c0_16], %29 {strides = array<i32>} : memref<2x128xf32, #tpu.memory_space<vmem>>, vector<2x128xf32>,
    return
  }
  func.func @transform_0(%arg0: i32) -> (i32, i32) {
    %c0_i32 = arith.constant 0 : i32
    %c0_i32_0 = arith.constant 0 : i32
    return %arg0, %c0_i32 : i32, i32
  }
  func.func @transform_1(%arg0: i32) -> (i32, i32, i32) {
    %c0_i32 = arith.constant 0 : i32
    %c0_i32_0 = arith.constant 0 : i32
    %c0_i32_1 = arith.constant 0 : i32
    return %arg0, %c0_i32, %c0_i32_0 : i32, i32, i32
  }
  func.func @transform_2(%arg0: i32) -> (i32, i32) {
    %c0_i32 = arith.constant 0 : i32
    %c0_i32_0 = arith.constant 0 : i32
    %c0_i32_1 = arith.constant 0 : i32
    return %c0_i32, %c0_i32_0 : i32, i32
  }
  func.func @transform_3(%arg0: i32) -> (i32, i32) {
    %c0_i32 = arith.constant 0 : i32
    %c0_i32_0 = arith.constant 0 : i32
    %c0_i32_1 = arith.constant 0 : i32
    return %c0_i32, %c0_i32_0 : i32, i32
  }
  func.func @transform_4(%arg0: i32) -> (i32, i32) {
    %c0_i32 = arith.constant 0 : i32
    %c0_i32_0 = arith.constant 0 : i32
    return %arg0, %c0_i32 : i32, i32
  }
}

</mosaic_0001>

<llo_original>
// kernel: tpu_custom_call.1
$region0: #{tpu_custom_call.1}
  #allocation0 [shape = 'u32[]', space=smem, size = 0x4, offset = 0x4, fixed_abs, tag = 'smem constant byte address 0x4 - core index']
  #allocation1 [shape = 'u32[144,128]{1,0:T(1,128)}', space=vmem, size = 0x12000, scoped, tag = 'internal scratch']
  #allocation2 [shape = 'f32[2,32]{1,0:T(2,128)}', space=vmem, size = 0x400, scoped, tag = 'scratch operand']
  #allocation3 [shape = 'f32[2,128]{1,0:T(2,128)}', space=vmem, size = 0x400, scoped, tag = 'scratch operand']
  %s0 = inlined_call_operand.hbm [shape: f32[2,32], index: 0, kind: input, shape index: {}]
  %s1 = inlined_call_operand.hbm [shape: f32[2,8,32], index: 1, kind: input, shape index: {}]
  %s2 = inlined_call_operand.hbm [shape: f32[32,32], index: 2, kind: input, shape index: {}]
  %s3 = inlined_call_operand.vmem [shape: f32[1,32], index: 3, kind: input, shape index: {}]
  %s4 = inlined_call_operand.hbm [shape: f32[2,128], index: 4, kind: output, shape index: {}]
  %s5 = sld [smem:[#allocation0]]
  $region45: #{tpu_custom_call.1} parent=0
    _
  %s7 = ssub.s32 1, %s5
  %s8 = scalar_select 0, %s7, %s5
  $region1: #{tpu_custom_call.1} parent=0
    #allocation4 [shape = 'u8[1024]{0}', space=vmem, size = 0x400, scoped, tag = 'input window, operand 0, single buffered']
    #allocation5 [shape = 's32[1]{0}', space=sflag, size = 0x4, scoped, tag = 'scoped memory for tpu_custom_call.1']
    #allocation6 [shape = 's32[1]{0}', space=sflag, size = 0x4, scoped, tag = 'scoped memory for tpu_custom_call.1']
    #allocation7 [shape = 'u8[8192]{0}', space=vmem, size = 0x2000, scoped, tag = 'input window, operand 1, single buffered']
    #allocation8 [shape = 's32[1]{0}', space=sflag, size = 0x4, scoped, tag = 'scoped memory for tpu_custom_call.1']
    #allocation9 [shape = 'u8[16384]{0}', space=vmem, size = 0x4000, scoped, tag = 'input window, operand 2, single buffered']
    #allocation10 [shape = 'u8[1024]{0}', space=vmem, size = 0x400, scoped, tag = 'output window, operand 0, single buffered']
    %9 = vsyncpa [#allocation5], 0
    %10 = vsyncpa [#allocation8], 0
    %11 = vsyncpa [#allocation6], 0
    // Predicated region
    $region2: #{tpu_custom_call.1} parent=1 // pred_check
      _
    $region3: #{tpu_custom_call.1} parent=1 // pred_check_branch
      %13 = sbr.rel (0) target = $region5
    $region4: #{tpu_custom_call.1} parent=1 // pred_region
      %s15 = ssub.s32 32, 32
      %16 = vsyncadd [#allocation5], %s15
      %s18 = sshll.u32 [#allocation4], 4
      %s19 = int_to_ptr.vmem [resolvable:$true] %s18
      %21 = dma.hbm_to_vmem [thread:$0]  %s0, 32, %s19, [#allocation5]
    $region5: #{tpu_custom_call.1} parent=1 // pred_fallthru
      _
    // Predicated region
    $region6: #{tpu_custom_call.1} parent=1 // pred_check
      _
    $region7: #{tpu_custom_call.1} parent=1 // pred_check_branch
      %23 = sbr.rel (0) target = $region9
    $region8: #{tpu_custom_call.1} parent=1 // pred_region
      %s25 = ssub.s32 256, 256
      %26 = vsyncadd [#allocation8], %s25
      %s27 = sshll.u32 [#allocation7], 4
      %s28 = int_to_ptr.vmem [resolvable:$true] %s27
      %33 = dma.hbm_to_vmem [thread:$0]  %s1, 256, %s28, [#allocation8], 128, 128, 8
    $region9: #{tpu_custom_call.1} parent=1 // pred_fallthru
      _
    // Predicated region
    $region10: #{tpu_custom_call.1} parent=1 // pred_check
      _
    $region11: #{tpu_custom_call.1} parent=1 // pred_check_branch
      %35 = sbr.rel (0) target = $region13
    $region12: #{tpu_custom_call.1} parent=1 // pred_region
      %s37 = ssub.s32 512, 512
      %38 = vsyncadd [#allocation8], %s37
      %s39 = sshll.u32 [#allocation9], 4
      %s40 = int_to_ptr.vmem [resolvable:$true] %s39
      %45 = dma.hbm_to_vmem [thread:$0]  %s2, 512, %s40, [#allocation8], 128, 128, 8
    $region13: #{tpu_custom_call.1} parent=1 // pred_fallthru
      _
    // Predicated region
    $region14: #{tpu_custom_call.1} parent=1 // pred_check
      _
    $region15: #{tpu_custom_call.1} parent=1 // pred_check_branch
      %47 = sbr.rel (0) target = $region17
    $region16: #{tpu_custom_call.1} parent=1 // pred_region
      _
    $region17: #{tpu_custom_call.1} parent=1 // pred_fallthru
      _
    // Predicated region
    $region18: #{tpu_custom_call.1} parent=1 // pred_check
      _
    $region19: #{tpu_custom_call.1} parent=1 // pred_check_branch
      %49 = sbr.rel (0) target = $region21
    $region20: #{tpu_custom_call.1} parent=1 // pred_region
      %50 = dma.done [#allocation5], 32
    $region21: #{tpu_custom_call.1} parent=1 // pred_fallthru
      _
    // Predicated region
    $region22: #{tpu_custom_call.1} parent=1 // pred_check
      _
    $region23: #{tpu_custom_call.1} parent=1 // pred_check_branch
      %52 = sbr.rel (0) target = $region25
    $region24: #{tpu_custom_call.1} parent=1 // pred_region
      %53 = dma.done [#allocation8], 256
    $region25: #{tpu_custom_call.1} parent=1 // pred_fallthru
      _
    // Predicated region
    $region26: #{tpu_custom_call.1} parent=1 // pred_check
      _
    $region27: #{tpu_custom_call.1} parent=1 // pred_check_branch
      %55 = sbr.rel (0) target = $region29
    $region28: #{tpu_custom_call.1} parent=1 // pred_region
      %56 = dma.done [#allocation8], 512
    $region29: #{tpu_custom_call.1} parent=1 // pred_fallthru
      _
    %v57 = vld [vmem:[#allocation4] sm:$0x3]
    %v58 = vld [vmem:[#allocation9] sm:$0xff]
    %v59 = vld [vmem:[#allocation9 + $0x8] sm:$0xff]
    %v60 = vld [vmem:[#allocation9 + $0x10] sm:$0xff]
    %v61 = vld [vmem:[#allocation9 + $0x18] sm:$0xff]
    %v62 = vld [vmem:[%s3] sm:$0x1]
    %v64 = vlaneseq
    %v65 = vshrl.u32 %v64, 7
    %v66 = vsub.s32 0, %v65
    %v67 = vrot.slane %v62, %v66
    %vm69 = vcmask 261120
    %v71 = vsel %vm69, %v57, 0
    %v74 = vsel %vm69, %v58, 0
    %v77 = vsel %vm69, %v59, 0
    %v80 = vsel %vm69, %v60, 0
    %v83 = vsel %vm69, %v61, 0
    %85 = vmatprep.subr.mxu0 0.0
    %86 = vmatpush1.xpose.msra.mxu0 0.0
    %87 = vmatprep.subr.mxu0 0.0
    %88 = vmatpush1.xpose.msra.mxu0 0.0
    %89 = vmatprep.subr.mxu0 0.0
    %90 = vmatpush1.xpose.msra.mxu0 0.0
    %91 = vmatprep.subr.mxu0 0.0
    %92 = vmatpush1.xpose.msra.mxu0 0.0
    %93 = vmatprep.subr.mxu0 0.0
    %94 = vmatpush1.xpose.msra.mxu0 0.0
    %95 = vmatprep.subr.mxu0 0.0
    %96 = vmatpush1.xpose.msra.mxu0 0.0
    %97 = vmatprep.subr.mxu0 0.0
    %98 = vmatpush1.xpose.msra.mxu0 0.0
    %99 = vmatprep.subr.mxu0 0.0
    %100 = vmatpush1.xpose.msra.mxu0 0.0
    %101 = vmatprep.subr.mxu0 0.0
    %102 = vmatpush1.xpose.msra.mxu0 0.0
    %103 = vmatprep.subr.mxu0 0.0
    %104 = vmatpush1.xpose.msra.mxu0 0.0
    %105 = vmatprep.subr.mxu0 0.0
    %106 = vmatpush1.xpose.msra.mxu0 0.0
    %107 = vmatprep.subr.mxu0 0.0
    %108 = vmatpush1.xpose.msra.mxu0 0.0
    %109 = vmatprep.subr.mxu0 0.0
    %110 = vmatpush1.xpose.msra.mxu0 %v83
    %111 = vmatprep.subr.mxu0 0.0
    %112 = vmatpush1.xpose.msra.mxu0 %v80
    %113 = vmatprep.subr.mxu0 0.0
    %114 = vmatpush1.xpose.msra.mxu0 %v77
    %115 = vmatprep.subr.mxu0 0.0
    %116 = vmatpush1.xpose.msra.mxu0 %v74
    %117 = vmatprep.subr.mxu0 0.0
    %118 = vmatpush2.xpose.msra.mxu0 0.0
    %119 = vmatprep.subr.mxu0 0.0
    %120 = vmatpush2.xpose.msra.mxu0 0.0
    %121 = vmatprep.subr.mxu0 0.0
    %122 = vmatpush2.xpose.msra.mxu0 0.0
    %123 = vmatprep.subr.mxu0 0.0
    %124 = vmatpush2.xpose.msra.mxu0 0.0
    %125 = vmatprep.subr.mxu0 0.0
    %126 = vmatpush2.xpose.msra.mxu0 0.0
    %127 = vmatprep.subr.mxu0 0.0
    %128 = vmatpush2.xpose.msra.mxu0 0.0
    %129 = vmatprep.subr.mxu0 0.0
    %130 = vmatpush2.xpose.msra.mxu0 0.0
    %131 = vmatprep.subr.mxu0 0.0
    %132 = vmatpush2.xpose.msra.mxu0 0.0
    %133 = vmatprep.subr.mxu0 0.0
    %134 = vmatpush2.xpose.msra.mxu0 0.0
    %135 = vmatprep.subr.mxu0 0.0
    %136 = vmatpush2.xpose.msra.mxu0 0.0
    %137 = vmatprep.subr.mxu0 0.0
    %138 = vmatpush2.xpose.msra.mxu0 0.0
    %139 = vmatprep.subr.mxu0 0.0
    %140 = vmatpush2.xpose.msra.mxu0 0.0
    %141 = vmatprep.subr.mxu0 0.0
    %142 = vmatpush2.xpose.msra.mxu0 0.0
    %143 = vmatprep.subr.mxu0 0.0
    %144 = vmatpush2.xpose.msra.mxu0 0.0
    %145 = vmatprep.subr.mxu0 0.0
    %146 = vmatpush2.xpose.msra.mxu0 0.0
    %147 = vmatprep.subr.mxu0 0.0
    %148 = vmatpush2.xpose.msra.mxu0 0.0
    %149 = vmatprep.mubr.f32.mxu0 0.0
    %150 = vmatmul.mubr.f32.gmra.mxu0 %v71
    %v151 = vpop.f32.mrf.mxu0
    %v152 = vadd.f32 %v67, %v151
    %v153 = vpop.f32.mrf.mxu0
    %154 = vdwg.mxu0
    %vm155 = vcmask 254976
    %156 = vst.msk [vmem:[#allocation2] sm:$0x3] %vm155, %v152
    loop: start=0, step=1, limit=2
    $region30: #{tpu_custom_call.1} parent=1 // loop_pre_header
      _
    $region31: #{tpu_custom_call.1} parent=1 // loop_header
      %s158 = sphi 0, %s162
      %p159 = scmp.ge.s32.totalorder %s158, 2
    $region32: #{tpu_custom_call.1} parent=1 // loop_header_branch
      %161 = sbr.rel (%p159) target = $region36
    $region33: #{tpu_custom_call.1} parent=1 // loop_body
      %s163 = scalar_lea.vmem [#allocation2], %s158
      %v164 = vld [vmem:[%s163] sm:$0x1]
      %s165 = smul.u32 %s158, 8
      %s166 = scalar_lea.vmem [#allocation7], %s165
      %v167 = vld [vmem:[%s166] sm:$0xff]
      %v169 = vsel %vm69, %v164, 0
      %v172 = vsel %vm69, %v167, 0
      %174 = vmatprep.subr.mxu0 0.0
      %175 = vmatpush1.xpose.msra.mxu0 0.0
      %176 = vmatprep.subr.mxu0 0.0
      %177 = vmatpush1.xpose.msra.mxu0 0.0
      %178 = vmatprep.subr.mxu0 0.0
      %179 = vmatpush1.xpose.msra.mxu0 0.0
      %180 = vmatprep.subr.mxu0 0.0
      %181 = vmatpush1.xpose.msra.mxu0 0.0
      %182 = vmatprep.subr.mxu0 0.0
      %183 = vmatpush1.xpose.msra.mxu0 0.0
      %184 = vmatprep.subr.mxu0 0.0
      %185 = vmatpush1.xpose.msra.mxu0 0.0
      %186 = vmatprep.subr.mxu0 0.0
      %187 = vmatpush1.xpose.msra.mxu0 0.0
      %188 = vmatprep.subr.mxu0 0.0
      %189 = vmatpush1.xpose.msra.mxu0 0.0
      %190 = vmatprep.subr.mxu0 0.0
      %191 = vmatpush1.xpose.msra.mxu0 0.0
      %192 = vmatprep.subr.mxu0 0.0
      %193 = vmatpush1.xpose.msra.mxu0 0.0
      %194 = vmatprep.subr.mxu0 0.0
      %195 = vmatpush1.xpose.msra.mxu0 0.0
      %196 = vmatprep.subr.mxu0 0.0
      %197 = vmatpush1.xpose.msra.mxu0 0.0
      %198 = vmatprep.subr.mxu0 0.0
      %199 = vmatpush1.xpose.msra.mxu0 0.0
      %200 = vmatprep.subr.mxu0 0.0
      %201 = vmatpush1.xpose.msra.mxu0 0.0
      %202 = vmatprep.subr.mxu0 0.0
      %203 = vmatpush1.xpose.msra.mxu0 0.0
      %204 = vmatprep.subr.mxu0 0.0
      %205 = vmatpush1.xpose.msra.mxu0 %v172
      %206 = vmatprep.subr.mxu0 0.0
      %207 = vmatpush2.xpose.msra.mxu0 0.0
      %208 = vmatprep.subr.mxu0 0.0
      %209 = vmatpush2.xpose.msra.mxu0 0.0
      %210 = vmatprep.subr.mxu0 0.0
      %211 = vmatpush2.xpose.msra.mxu0 0.0
      %212 = vmatprep.subr.mxu0 0.0
      %213 = vmatpush2.xpose.msra.mxu0 0.0
      %214 = vmatprep.subr.mxu0 0.0
      %215 = vmatpush2.xpose.msra.mxu0 0.0
      %216 = vmatprep.subr.mxu0 0.0
      %217 = vmatpush2.xpose.msra.mxu0 0.0
      %218 = vmatprep.subr.mxu0 0.0
      %219 = vmatpush2.xpose.msra.mxu0 0.0
      %220 = vmatprep.subr.mxu0 0.0
      %221 = vmatpush2.xpose.msra.mxu0 0.0
      %222 = vmatprep.subr.mxu0 0.0
      %223 = vmatpush2.xpose.msra.mxu0 0.0
      %224 = vmatprep.subr.mxu0 0.0
      %225 = vmatpush2.xpose.msra.mxu0 0.0
      %226 = vmatprep.subr.mxu0 0.0
      %227 = vmatpush2.xpose.msra.mxu0 0.0
      %228 = vmatprep.subr.mxu0 0.0
      %229 = vmatpush2.xpose.msra.mxu0 0.0
      %230 = vmatprep.subr.mxu0 0.0
      %231 = vmatpush2.xpose.msra.mxu0 0.0
      %232 = vmatprep.subr.mxu0 0.0
      %233 = vmatpush2.xpose.msra.mxu0 0.0
      %234 = vmatprep.subr.mxu0 0.0
      %235 = vmatpush2.xpose.msra.mxu0 0.0
      %236 = vmatprep.subr.mxu0 0.0
      %237 = vmatpush2.xpose.msra.mxu0 0.0
      %238 = vmatprep.mubr.f32.mxu0 0.0
      %239 = vmatmul.mubr.f32.gmra.mxu0 %v169
      %v240 = vpop.f32.mrf.mxu0
      %v241 = vadd.f32 0.0, %v240
      %v242 = vpop.f32.mrf.mxu0
      %243 = vdwg.mxu0
      %s244 = scalar_lea.vmem [#allocation3], %s158
      %vm245 = vcmask 57344
      %246 = vst.msk [vmem:[%s244] sm:$0x1] %vm245, %v241
    $region34: #{tpu_custom_call.1} parent=1 // loop_footer
      %s162 = sadd.s32 1, %s158
    $region35: #{tpu_custom_call.1} parent=1 // loop_footer_branch
      %157 = sbr.rel target = $region31
    $region36: #{tpu_custom_call.1} parent=1 // loop_exit
      _
    %v247 = vld [vmem:[#allocation3] sm:$0x3]
    %v248 = vmul.f32 %v247, 0.17677669
    %v249 = vlaneseq
    %v250 = vand.u32 %v249, 127
    %vm251 = vcmp.lt.s32.totalorder %v250, 8
    %v252 = vsel %vm251, %v248, -1e+30
    %vm253 = vcmask 1041408
    %v254 = vsel %vm253, %v252, -inf
    %255 = vmax.xlane.f32.xlu0 %v254
    %v256 = vpop.xlane.xlu0 %255
    %v257 = vsub.f32 %v252, %v256
    %v258 = vmul.f32 %v257, 1.442695
    %v259 = vpow.pop %v258
    %v260 = vsel %vm253, %v259, 0.0
    %261 = vadd.xlane.f32.xlu0 %v260
    %v262 = vpop.xlane.xlu0 %261
    %v263 = vrcp.pop %v262
    %v264 = vmul.f32 %v262, %v263
    %v265 = vsub.f32 2.0, %v264
    %v266 = vmul.f32 %v263, %v265
    %v267 = vmul.f32 %v259, %v266
    %268 = vst [vmem:[#allocation10] sm:$0x3] %v267
    // Predicated region
    $region37: #{tpu_custom_call.1} parent=1 // pred_check
      _
    $region38: #{tpu_custom_call.1} parent=1 // pred_check_branch
      %270 = sbr.rel (0) target = $region40
    $region39: #{tpu_custom_call.1} parent=1 // pred_region
      %s272 = ssub.s32 32, 32
      %273 = vsyncadd [#allocation6], %s272
      %s275 = sshll.u32 [#allocation10], 4
      %s276 = int_to_ptr.vmem [resolvable:$true] %s275
      %278 = dma.vmem_to_hbm [thread:$0]  %s276, 32, %s4, [#allocation6]
    $region40: #{tpu_custom_call.1} parent=1 // pred_fallthru
      _
    // Predicated region
    $region41: #{tpu_custom_call.1} parent=1 // pred_check
      _
    $region42: #{tpu_custom_call.1} parent=1 // pred_check_branch
      %280 = sbr.rel (0) target = $region44
    $region43: #{tpu_custom_call.1} parent=1 // pred_region
      %281 = dma.done [#allocation6], 32
    $region44: #{tpu_custom_call.1} parent=1 // pred_fallthru
      _
    %282 = vsyncpa [#allocation5], 1
    %283 = vsyncpa [#allocation8], 1
    %284 = vsyncpa [#allocation6], 1

</llo_original>
